<compile_context>
chip_gen: v7x
topology: tpu7x:2x2x1
jax: 0.10.0
libtpu: 0.0.40
codegen_flags: <defaults>
</compile_context>

<pallas_src>
import functools

import jax
import jax.numpy as jnp
from jax.experimental import pallas as pl
from jax.experimental.pallas import tpu as pltpu


def _pad_mask_kernel(x_ref, o_ref, *, pad_ix: int):
    # Load at native dtype, widen to i32 in vregs (free: VALU has huge slack in
    # this DMA-bound kernel), single VPU cmp per vreg, bool store (1 B/elem).
    o_ref[...] = x_ref[...].astype(jnp.int32) != jnp.int32(pad_ix)


def _round_up(x: int, m: int) -> int:
    return ((x + m - 1) // m) * m


def _balanced_tile(dim: int, target: int, unit: int) -> int:
    """Full extent if it fits `target`, else roughly-even unit-aligned tiles."""
    if dim <= target:
        return dim  # block == full array dim satisfies the (8,128) tiling rule
    nblocks = pl.cdiv(dim, target)
    return min(dim, _round_up(pl.cdiv(dim, nblocks), unit))


def pad_masker(input_ids: jax.Array, pad_ix: int, *,
               tb: int = 512, ts: int = 4096,
               min_kernel_bytes: int = 1 << 16) -> jax.Array:
    """Pallas equivalent of PadMasker.forward -> (B, 1, 1, S) bool mask."""
    B, S = input_ids.shape
    pad_ix = int(pad_ix)

    if input_ids.dtype.itemsize > 4:
        # Rare x64 ids: keep the kernel on 32-bit vregs. Vocab ids < 2^31 so
        # this cannot alias a non-pad id onto pad_ix.
        input_ids = input_ids.astype(jnp.int32)

    in_bytes = input_ids.dtype.itemsize
    total_bytes = B * S * (in_bytes + 1)

    # Small-input bypass: launch + DMA setup dwarfs the work; let XLA fuse.
    if total_bytes <= min_kernel_bytes:
        return (input_ids != pad_ix).reshape(B, 1, 1, S)

    TB = _balanced_tile(B, tb, 32)    # bool output native tile is (32, 128)
    TS = _balanced_tile(S, ts, 128)   # lane-dense (mult. of 128) -> unmasked vst

    # v7x megacore: guarantee >= 2 grid points along a "parallel" axis when the
    # whole array would otherwise collapse to a single block.
    if TB == B and TS == S and total_bytes > (1 << 20):
        if S >= 256:
            TS = _round_up(pl.cdiv(S, 2), 128)
        elif B >= 64:
            TB = _round_up(pl.cdiv(B, 2), 32)

    grid = (pl.cdiv(B, TB), pl.cdiv(S, TS))

    # Double-buffered footprint (input + output blocks); explicit scoped-VMEM
    # limit so large tiles also compile on v5e (16 MiB scoped default), while
    # staying under v7x's 64 MiB physical VMEM.
    footprint = 2 * TB * TS * (in_bytes + 1)
    vmem_limit = int(min(48 << 20, max(16 << 20, footprint + (4 << 20))))

    cost = pl.CostEstimate(flops=B * S, transcendentals=0,
                           bytes_accessed=total_bytes)

    mask_2d = pl.pallas_call(
        functools.partial(_pad_mask_kernel, pad_ix=pad_ix),
        out_shape=jax.ShapeDtypeStruct((B, S), jnp.bool_),
        grid=grid,
        in_specs=[pl.BlockSpec((TB, TS), lambda i, j: (i, j))],
        out_specs=pl.BlockSpec((TB, TS), lambda i, j: (i, j)),
        compiler_params=pltpu.CompilerParams(
            dimension_semantics=("parallel", "parallel"),
            vmem_limit_bytes=vmem_limit),
        cost_estimate=cost,
    )(input_ids)

    # Glue: expand to (B, 1, 1, S) -> (batch, head, query, key) broadcast form.
    return mask_2d.reshape(B, 1, 1, S)


def naive_pad_masker(input_ids: jax.Array, pad_ix: int, **kw) -> jax.Array:
    """Pallas equivalent of NaivePadMasker.forward -> (B, 1, S)."""
    return pad_masker(input_ids, pad_ix, **kw)[:, 0]  # (B, 1, S)


if __name__ == "__main__":
    PAD_IX = 0
    key = jax.random.PRNGKey(0)
    k0, k1, k2 = jax.random.split(key, 3)

    # (1) Tiny module-scale shape -> small-input bypass path (plain XLA compare).
    B, S = 2, 8
    ids = jax.random.randint(k0, (B, S), minval=0, maxval=10, dtype=jnp.int32)
    mask = jax.block_until_ready(pad_masker(ids, PAD_IX))
    assert mask.shape == (B, 1, 1, S), mask.shape
    assert mask.dtype == jnp.bool_, mask.dtype
    assert bool(jnp.all(mask == (ids != PAD_IX).reshape(B, 1, 1, S)))

    naive = jax.block_until_ready(naive_pad_masker(ids, PAD_IX))
    assert naive.shape == (B, 1, S)
    assert bool(jnp.all(naive == (ids != PAD_IX).reshape(B, 1, S)))

    # (2) Force the Pallas path at a small gridded shape: non-divisible edge
    #     blocks + int8 ids (native-dtype in-kernel compare, no wrapper astype).
    B2, S2 = 48, 320
    ids2 = jax.random.randint(k1, (B2, S2), minval=0, maxval=4, dtype=jnp.int8)
    mask2 = jax.block_until_ready(
        pad_masker(ids2, PAD_IX, tb=32, ts=128, min_kernel_bytes=0))  # grid (2, 3)
    assert mask2.dtype == jnp.bool_
    assert bool(jnp.all(mask2 == (ids2 != PAD_IX).reshape(B2, 1, 1, S2)))

    # (3) Shape that fits one block but is bandwidth-meaningful -> exercises the
    #     megacore split (grid becomes (1, 2)).
    B3, S3 = 128, 2048
    ids3 = jax.random.randint(k2, (B3, S3), minval=0, maxval=4, dtype=jnp.int32)
    mask3 = jax.block_until_ready(pad_masker(ids3, PAD_IX))
    assert bool(jnp.all(mask3 == (ids3 != PAD_IX).reshape(B3, 1, 1, S3)))

    print("KERNEL_OK")
</pallas_src>

<mosaic_0001>
module attributes {stable_mosaic.version = 11 : i64} {
  func.func @_pad_mask_kernel(%arg0: i32, %arg1: i32, %arg2: memref<32x128xi8, #tpu.memory_space<vmem>>, %arg3: memref<32x128xi32, #tpu.memory_space<vmem>>) attributes {dimension_semantics = [#tpu.dimension_semantics<parallel>, #tpu.dimension_semantics<parallel>], iteration_bounds = array<i64: 2, 3>, scalar_prefetch = 0 : i64, scratch_operands = 0 : i64, tpu.core_type = #tpu.core_type<tc>, window_params = [{transform_indices = @transform_0, window_bounds = array<i64: 32, 128>}, {transform_indices = @transform_1, window_bounds = array<i64: 32, 128>}]} {
    %c0 = arith.constant 0 : index
    %c0_0 = arith.constant 0 : index
    %0 = vector.load %arg2[%c0, %c0_0] : memref<32x128xi8, #tpu.memory_space<vmem>>, vector<32x128xi8>
    %1 = arith.extsi %0 : vector<32x128xi8> to vector<32x128xi32>
    %c0_i32 = arith.constant 0 : i32
    %2 = vector.broadcast %c0_i32 : i32 to vector<32x128xi32>
    %3 = arith.cmpi ne, %1, %2 : vector<32x128xi32>
    %c0_1 = arith.constant 0 : index
    %c0_2 = arith.constant 0 : index
    %4 = vector.load %arg3[%c0_1, %c0_2] : memref<32x128xi32, #tpu.memory_space<vmem>>, vector<32x128xi32>
    %5 = arith.extui %3 : vector<32x128xi1> to vector<32x128xi32>
    %cst = arith.constant dense<0> : vector<32x128xi32>
    %6 = arith.cmpi ne, %4, %cst : vector<32x128xi32>
    tpu.vector_store %arg3[%c0_1, %c0_2], %5 {strides = array<i32>} : memref<32x128xi32, #tpu.memory_space<vmem>>, vector<32x128xi32>,
    return
  }
  func.func @transform_0(%arg0: i32, %arg1: i32) -> (i32, i32) {
    %c0_i32 = arith.constant 0 : i32
    return %arg0, %arg1 : i32, i32
  }
  func.func @transform_1(%arg0: i32, %arg1: i32) -> (i32, i32) {
    %c0_i32 = arith.constant 0 : i32
    return %arg0, %arg1 : i32, i32
  }
}

</mosaic_0001>

<llo_original>
// kernel: tpu_custom_call.1
$region0: #{tpu_custom_call.1}
  #allocation0 [shape = 'u32[]', space=smem, size = 0x4, offset = 0x4, fixed_abs, tag = 'smem constant byte address 0x4 - core index']
  #allocation1 [shape = 'u32[144,128]{1,0:T(1,128)}', space=vmem, size = 0x12000, scoped, tag = 'internal scratch']
  %s0 = inlined_call_operand.hbm [shape: s8[48,320], index: 0, kind: input, shape index: {}]
  %s1 = inlined_call_operand.vmem [shape: s32[48,320], index: 1, kind: output, shape index: {}]
  %s2 = sld [smem:[#allocation0]]
  $region89: #{tpu_custom_call.1} parent=0
    _
  %s4 = ssub.s32 1, %s2
  %s5 = scalar_select 0, %s4, %s2
  $region1: #{tpu_custom_call.1} parent=0
    #allocation2 [shape = 'u8[8192]{0}', space=vmem, size = 0x2000, scoped, tag = 'input window, operand 0']
    #allocation3 [shape = 's32[2]{0}', space=sflag, size = 0x8, scoped, tag = 'scoped memory for tpu_custom_call.1']
    #allocation4 [shape = 'u8[32768]{0}', space=vmem, size = 0x8000, scoped, tag = 'output window, operand 0']
    %6 = vsyncpa [#allocation3], 0
    %s7 = scalar_lea.sflag [#allocation3], 1
    %8 = vsyncpa %s7, 0
    loop: start=0, step=1, limit=8
    $region2: #{tpu_custom_call.1} parent=1 // loop_pre_header
      _
    $region3: #{tpu_custom_call.1} parent=1 // loop_header
      %s10 = sphi 0, %s14
      %p11 = scmp.ge.s32.totalorder %s10, 8
      %s17 = sphi 0, %s29
      %s18 = sphi 0, %s25
      %s19 = sphi 0, %s17
      %s20 = sphi 0, %s18
      %s21 = sphi 0, %s19
      %s22 = sphi 0, %s20
      %s34 = sphi 0, %s36
      %s37 = sphi 0, %s34
      %s38 = sphi 0, %s37
      %s54 = sphi 0, %s38
      %s62 = sphi 0, %s64
      %s65 = sphi 0, %s62
      %s66 = sphi 0, %s65
      %s82 = sphi 0, %s66
    $region4: #{tpu_custom_call.1} parent=1 // loop_header_branch
      %13 = sbr.rel (%p11) target = $region8
    $region5: #{tpu_custom_call.1} parent=1 // loop_body
      %s15 = ssub.s32 %s10, 1
      %s16 = ssub.s32 %s10, 2
      %s23 = sadd.s32 1, %s18
      %p24 = scmp.ge.s32.totalorder %s23, 3
      %s25 = scalar_select %p24, 0, %s23
      %s26 = sadd.s32 1, %s17
      %s27 = scalar_select %p24, %s26, %s17
      %p28 = scmp.ge.s32.totalorder %s27, 2
      %s29 = scalar_select %p28, 0, %s27
      %s30 = ssub.s32 %s17, %s29
      %s31 = ssub.s32 %s18, %s25
      %s32 = sor.u32 %s30, %s31
      %p33 = scmp.eq.s32.totalorder %s32, 0
      %s35 = sadd.s32 %s34, 1
      %s36 = scalar_select %p33, %s34, %s35
      %p39 = pneg %p33
      %p40 = scmp.eq.s32.totalorder %s10, 5
      %p41 = por %p39, %p40
      %p42 = scmp.ne.s32.totalorder %s34, %s37
      %p43 = scmp.eq.s32.totalorder %s10, 0
      %p44 = por %p42, %p43
      %p45 = scmp.ne.s32.totalorder %s34, %s37
      %p46 = scmp.eq.s32.totalorder %s15, 5
      %p47 = por %p45, %p46
      %p48 = scmp.ne.s32.totalorder %s37, %s38
      %p49 = scmp.eq.s32.totalorder %s15, 0
      %p50 = por %p48, %p49
      %p51 = scmp.ne.s32.totalorder %s37, %s38
      %p52 = scmp.eq.s32.totalorder %s16, 5
      %p53 = por %p51, %p52
      %p55 = scmp.ne.s32.totalorder %s38, %s54
      %p56 = scmp.eq.s32.totalorder %s16, 0
      %p57 = por %p55, %p56
      %s58 = ssub.s32 %s17, %s29
      %s59 = ssub.s32 %s18, %s25
      %s60 = sor.u32 %s58, %s59
      %p61 = scmp.eq.s32.totalorder %s60, 0
      %s63 = sadd.s32 %s62, 1
      %s64 = scalar_select %p61, %s62, %s63
      %p67 = pneg %p61
      %p68 = scmp.eq.s32.totalorder %s10, 5
      %p69 = por %p67, %p68
      %p70 = scmp.ne.s32.totalorder %s62, %s65
      %p71 = scmp.eq.s32.totalorder %s10, 0
      %p72 = por %p70, %p71
      %p73 = scmp.ne.s32.totalorder %s62, %s65
      %p74 = scmp.eq.s32.totalorder %s15, 5
      %p75 = por %p73, %p74
      %p76 = scmp.ne.s32.totalorder %s65, %s66
      %p77 = scmp.eq.s32.totalorder %s15, 0
      %p78 = por %p76, %p77
      %p79 = scmp.ne.s32.totalorder %s65, %s66
      %p80 = scmp.eq.s32.totalorder %s16, 5
      %p81 = por %p79, %p80
      %p83 = scmp.ne.s32.totalorder %s66, %s82
      %p84 = scmp.eq.s32.totalorder %s16, 0
      %p85 = por %p83, %p84
      %p86 = scmp.le.s32.totalorder 1, %s10
      %p87 = scmp.lt.s32.totalorder %s10, 7
      %p88 = pnand %p86, %p87
      %p89 = pneg %p88
      // Predicated region
      $region9: #{tpu_custom_call.1} parent=5 // pred_check
        _
      $region10: #{tpu_custom_call.1} parent=5 // pred_check_branch
        %91 = sbr.rel (%p88) target = $region12
      $region11: #{tpu_custom_call.1} parent=5 // pred_region
        %s92 = ssub.s32 %s10, 1
      $region12: #{tpu_custom_call.1} parent=5 // pred_fallthru
        _
      %p93 = scmp.lt.s32.totalorder %s10, 6
      // Predicated region
      $region13: #{tpu_custom_call.1} parent=5 // pred_check
        %p94 = pneg %p93
      $region14: #{tpu_custom_call.1} parent=5 // pred_check_branch
        %96 = sbr.rel (%p94) target = $region16
      $region15: #{tpu_custom_call.1} parent=5 // pred_region
        // Predicated region
        $region17: #{tpu_custom_call.1} parent=15 // pred_check
          %p97 = pneg %p44
        $region18: #{tpu_custom_call.1} parent=15 // pred_check_branch
          %99 = sbr.rel (%p97) target = $region20
        $region19: #{tpu_custom_call.1} parent=15 // pred_region
          %s100 = sand.u32 %s34, 1
          %s101 = scalar_lea.sflag [#allocation3], %s100
          %s102 = sand.u32 %s34, 1
          %s103 = smul.addr %s102, 8
          %s104 = scalar_lea.vmem [#allocation2], %s103
          %s105 = smul.u32 4, %s17
          %s106 = ssub.s32 6, %s105
          %p107 = scmp.lt.s32.totalorder %s106, 4
          %s108 = scalar_select %p107, %s106, 4
          %s109 = smul.u32 32, %s108
          %s111 = ssub.s32 128, %s109
          %112 = vsyncadd %s101, %s111
          %p113 = scmp.ne.s32.totalorder 0, %s109
          %s114 = smul.addr %s105, 3
          %s115 = sadd.s32 %s18, %s114
          %s116 = smul.addr %s115, 32
          %s117 = scalar_lea.hbm %s0, %s116
          %s118 = smul.u32 2, %s108
          %s119 = sshll.u32 %s104, 4
          %s120 = int_to_ptr.vmem [resolvable:$true] %s119
          %s121 = sshll.u32 %s118, 4
          %125 = dma.hbm_to_vmem [thread:$0]  (%p113), %s117, %s121, %s120, %s101, 96, 32, 2
        $region20: #{tpu_custom_call.1} parent=15 // pred_fallthru
          _
      $region16: #{tpu_custom_call.1} parent=5 // pred_fallthru
        _
      %p126 = scmp.le.s32.totalorder 1, %s10
      %p127 = scmp.lt.s32.totalorder %s10, 7
      %p128 = pnand %p126, %p127
      %p129 = pneg %p128
      // Predicated region
      $region21: #{tpu_custom_call.1} parent=5 // pred_check
        _
      $region22: #{tpu_custom_call.1} parent=5 // pred_check_branch
        %131 = sbr.rel (%p128) target = $region24
      $region23: #{tpu_custom_call.1} parent=5 // pred_region
        %s132 = ssub.s32 %s10, 1
        %s133 = sand.u32 %s37, 1
        %s134 = scalar_lea.sflag [#allocation3], %s133
        %s135 = sand.u32 %s37, 1
        %s136 = smul.addr %s135, 8
        %s137 = scalar_lea.vmem [#allocation2], %s136
        // Predicated region
        $region25: #{tpu_custom_call.1} parent=23 // pred_check
          %p138 = pneg %p50
        $region26: #{tpu_custom_call.1} parent=23 // pred_check_branch
          %140 = sbr.rel (%p138) target = $region28
        $region27: #{tpu_custom_call.1} parent=23 // pred_region
          %141 = dma.done %s134, 128
        $region28: #{tpu_custom_call.1} parent=23 // pred_fallthru
          _
        %s142 = sand.u32 %s37, 1
        %s143 = scalar_lea.sflag [#allocation3], %s142
        %s144 = sand.u32 %s37, 1
        %s145 = smul.addr %s144, 8
        %s146 = scalar_lea.vmem [#allocation2], %s145
        %p147 = pneg %p50
        %p148 = pneg %p47
        %p149 = pneg %p78
        %p150 = pneg %p75
        %s151 = sand.u32 %s65, 1
        %s152 = sand.u32 %s65, 1
        %s153 = smul.addr %s152, 32
        %s154 = scalar_lea.vmem [#allocation4], %s153
        %s155 = smul.u32 4, %s19
        %s156 = ssub.s32 6, %s155
        %p157 = scmp.lt.s32.totalorder %s156, 4
        %s158 = scalar_select %p157, %s156, 4
        %s159 = smul.u32 32, %s158
        %s160 = smul.u32 4, %s19
        %s161 = ssub.s32 6, %s160
        %p162 = scmp.lt.s32.totalorder %s161, 4
        %s163 = scalar_select %p162, %s161, 4
        %s164 = smul.u32 128, %s163
        %v165 = vld [vmem:[%s137] sm:$0x3]
        %v166 = vld [vmem:[%s137 + $0x2] sm:$0x3]
        %v167 = vld [vmem:[%s137 + $0x4] sm:$0x3]
        %v168 = vld [vmem:[%s137 + $0x6] sm:$0x3]
        %v169 = vunpack.c.0.s8 %v165
        %v170 = vunpack.c.0.s8 %v166
        %v171 = vunpack.c.0.s8 %v167
        %v172 = vunpack.c.0.s8 %v168
        %vm173 = vcmp.ne.s32.totalorder %v169, 0
        %vm174 = vcmp.ne.s32.totalorder %v170, 0
        %vm175 = vcmp.ne.s32.totalorder %v171, 0
        %vm176 = vcmp.ne.s32.totalorder %v172, 0
        %v177 = vsel %vm173, 1, 0
        %v178 = vsel %vm174, 1, 0
        %v179 = vsel %vm175, 1, 0
        %v180 = vsel %vm176, 1, 0
        %181 = vst [vmem:[%s154] sm:$0xff] %v177
        %182 = vst [vmem:[%s154 + $0x8] sm:$0xff] %v178
        %183 = vst [vmem:[%s154 + $0x10] sm:$0xff] %v179
        %184 = vst [vmem:[%s154 + $0x18] sm:$0xff] %v180
        %s185 = sand.u32 %s65, 1
        %s186 = sand.u32 %s65, 1
        %s187 = smul.addr %s186, 32
        %s188 = scalar_lea.vmem [#allocation4], %s187
        // Predicated region
        $region29: #{tpu_custom_call.1} parent=23 // pred_check
          %p189 = pneg %p75
        $region30: #{tpu_custom_call.1} parent=23 // pred_check_branch
          %191 = sbr.rel (%p189) target = $region32
        $region31: #{tpu_custom_call.1} parent=23 // pred_region
          %s192 = smul.u32 4, %s19
          %s193 = ssub.s32 6, %s192
          %p194 = scmp.lt.s32.totalorder %s193, 4
          %s195 = scalar_select %p194, %s193, 4
          %s196 = smul.u32 128, %s195
          %p197 = scmp.ne.s32.totalorder 0, %s196
          %s198 = smul.addr %s192, 3
          %s199 = sadd.s32 %s20, %s198
          %s200 = smul.addr %s199, 8
          %s201 = scalar_lea.vmem %s1, %s200
          // Predicated region
          $region33: #{tpu_custom_call.1} parent=31 // pred_check
            %p202 = pneg %p197
          $region34: #{tpu_custom_call.1} parent=31 // pred_check_branch
            %204 = sbr.rel (%p202) target = $region36
          $region35: #{tpu_custom_call.1} parent=31 // pred_region
            // Predicated region
            $region37: #{tpu_custom_call.1} parent=35 // pred_check
              _
            $region38: #{tpu_custom_call.1} parent=35 // pred_check_branch
              %206 = sbr.rel (0) target = $region40
            $region39: #{tpu_custom_call.1} parent=35 // pred_region
              // Predicated region
              $region59: #{tpu_custom_call.1} parent=39 // pred_check
                _
              $region60: #{tpu_custom_call.1} parent=39 // pred_check_branch
                %261 = sbr.rel (0) target = $region62
              $region61: #{tpu_custom_call.1} parent=39 // pred_region
                %s262 = sshrl.u32 %s195, 2
                // While loop
                $region63: #{tpu_custom_call.1} parent=61 // loop_pre_header
                  _
                $region64: #{tpu_custom_call.1} parent=61 // loop_header
                  %s264 = sphi 0, %s266
                  %p265 = scmp.ge.s32.totalorder %s264, %s262
                  %s269 = sphi 0, %s282
                  %s270 = sphi %s188, %s285
                  %s271 = sphi %s201, %s286
                $region65: #{tpu_custom_call.1} parent=61 // loop_header_branch
                  %268 = sbr.rel (%p265) target = $region69
                $region66: #{tpu_custom_call.1} parent=61 // loop_body
                  %v272 = vld [vmem:[%s270] sm:$0xff]
                  %273 = vst [vmem:[%s271] sm:$0xff] %v272
                  %v274 = vld [vmem:[%s270 + $0x8] sm:$0xff]
                  %275 = vst [vmem:[%s271 + $0x18] sm:$0xff] %v274
                  %v276 = vld [vmem:[%s270 + $0x10] sm:$0xff]
                  %277 = vst [vmem:[%s271 + $0x30] sm:$0xff] %v276
                  %v278 = vld [vmem:[%s270 + $0x18] sm:$0xff]
                  %279 = vst [vmem:[%s271 + $0x48] sm:$0xff] %v278
                  %s280 = sadd.s32 1, %s269
                  %p281 = scmp.ge.s32.totalorder %s280, %s262
                  %s282 = scalar_select %p281, 0, %s280
                  %s283 = smul.u32 %s282, 32
                  %s284 = smul.u32 %s282, 96
                  %s285 = scalar_lea.vmem %s188, %s283 [#allocation4]
                  %s286 = scalar_lea.vmem %s201, %s284
                $region67: #{tpu_custom_call.1} parent=61 // loop_footer
                  %s266 = sadd.s32 %s264, 1
                $region68: #{tpu_custom_call.1} parent=61 // loop_footer_branch
                  %263 = sbr.rel target = $region64
                $region69: #{tpu_custom_call.1} parent=61 // loop_exit
                  _
                %s287 = sshrl.u32 %s195, 2
                %s288 = sand.u32 %s195, 3
                %s289 = smul.u32 %s287, 4
                %s290 = smul.u32 8, %s289
                %s291 = scalar_lea.vmem %s188, %s290 [#allocation4]
                %s292 = smul.u32 24, %s289
                %s293 = scalar_lea.vmem %s201, %s292
                // While loop
                $region70: #{tpu_custom_call.1} parent=61 // loop_pre_header
                  _
                $region71: #{tpu_custom_call.1} parent=61 // loop_header
                  %s295 = sphi 0, %s297
                  %p296 = scmp.ge.s32.totalorder %s295, %s288
                  %s300 = sphi 0, %s307
                  %s301 = sphi %s291, %s310
                  %s302 = sphi %s293, %s311
                $region72: #{tpu_custom_call.1} parent=61 // loop_header_branch
                  %299 = sbr.rel (%p296) target = $region76
                $region73: #{tpu_custom_call.1} parent=61 // loop_body
                  %v303 = vld [vmem:[%s301] sm:$0xff]
                  %304 = vst [vmem:[%s302] sm:$0xff] %v303
                  %s305 = sadd.s32 1, %s300
                  %p306 = scmp.ge.s32.totalorder %s305, %s288
                  %s307 = scalar_select %p306, 0, %s305
                  %s308 = smul.u32 %s307, 8
                  %s309 = smul.u32 %s307, 24
                  %s310 = scalar_lea.vmem %s291, %s308 [#allocation4]
                  %s311 = scalar_lea.vmem %s293, %s309
                $region74: #{tpu_custom_call.1} parent=61 // loop_footer
                  %s297 = sadd.s32 %s295, 1
                $region75: #{tpu_custom_call.1} parent=61 // loop_footer_branch
                  %294 = sbr.rel target = $region71
                $region76: #{tpu_custom_call.1} parent=61 // loop_exit
                  _
              $region62: #{tpu_custom_call.1} parent=39 // pred_fallthru
                _
              // Predicated region
              $region77: #{tpu_custom_call.1} parent=39 // pred_check
                _
              $region78: #{tpu_custom_call.1} parent=39 // pred_check_branch
                %313 = sbr.rel target = $region80
              $region79: #{tpu_custom_call.1} parent=39 // pred_region
                _
              $region80: #{tpu_custom_call.1} parent=39 // pred_fallthru
                _
            $region40: #{tpu_custom_call.1} parent=35 // pred_fallthru
              _
            // Predicated region
            $region41: #{tpu_custom_call.1} parent=35 // pred_check
              _
            $region42: #{tpu_custom_call.1} parent=35 // pred_check_branch
              %208 = sbr.rel target = $region44
            $region43: #{tpu_custom_call.1} parent=35 // pred_region
              %s210 = sshrl.u32 %s195, 2
              // While loop
              $region45: #{tpu_custom_call.1} parent=43 // loop_pre_header
                _
              $region46: #{tpu_custom_call.1} parent=43 // loop_header
                %s212 = sphi 0, %s214
                %p213 = scmp.ge.s32.totalorder %s212, %s210
                %s217 = sphi 0, %s230
                %s218 = sphi %s188, %s233
                %s219 = sphi %s201, %s234
              $region47: #{tpu_custom_call.1} parent=43 // loop_header_branch
                %216 = sbr.rel (%p213) target = $region51
              $region48: #{tpu_custom_call.1} parent=43 // loop_body
                %v220 = vld [vmem:[%s218] sm:$0xff]
                %221 = vst [vmem:[%s219] sm:$0xff] %v220
                %v222 = vld [vmem:[%s218 + $0x8] sm:$0xff]
                %223 = vst [vmem:[%s219 + $0x18] sm:$0xff] %v222
                %v224 = vld [vmem:[%s218 + $0x10] sm:$0xff]
                %225 = vst [vmem:[%s219 + $0x30] sm:$0xff] %v224
                %v226 = vld [vmem:[%s218 + $0x18] sm:$0xff]
                %227 = vst [vmem:[%s219 + $0x48] sm:$0xff] %v226
                %s228 = sadd.s32 1, %s217
                %p229 = scmp.ge.s32.totalorder %s228, %s210
                %s230 = scalar_select %p229, 0, %s228
                %s231 = smul.u32 %s230, 32
                %s232 = smul.u32 %s230, 96
                %s233 = scalar_lea.vmem %s188, %s231 [#allocation4]
                %s234 = scalar_lea.vmem %s201, %s232
              $region49: #{tpu_custom_call.1} parent=43 // loop_footer
                %s214 = sadd.s32 %s212, 1
              $region50: #{tpu_custom_call.1} parent=43 // loop_footer_branch
                %211 = sbr.rel target = $region46
              $region51: #{tpu_custom_call.1} parent=43 // loop_exit
                _
              %s235 = sshrl.u32 %s195, 2
              %s236 = sand.u32 %s195, 3
              %s237 = smul.u32 %s235, 4
              %s238 = smul.u32 8, %s237
              %s239 = scalar_lea.vmem %s188, %s238 [#allocation4]
              %s240 = smul.u32 24, %s237
              %s241 = scalar_lea.vmem %s201, %s240
              // While loop
              $region52: #{tpu_custom_call.1} parent=43 // loop_pre_header
                _
              $region53: #{tpu_custom_call.1} parent=43 // loop_header
                %s243 = sphi 0, %s245
                %p244 = scmp.ge.s32.totalorder %s243, %s236
                %s248 = sphi 0, %s255
                %s249 = sphi %s239, %s258
                %s250 = sphi %s241, %s259
              $region54: #{tpu_custom_call.1} parent=43 // loop_header_branch
                %247 = sbr.rel (%p244) target = $region58
              $region55: #{tpu_custom_call.1} parent=43 // loop_body
                %v251 = vld [vmem:[%s249] sm:$0xff]
                %252 = vst [vmem:[%s250] sm:$0xff] %v251
                %s253 = sadd.s32 1, %s248
                %p254 = scmp.ge.s32.totalorder %s253, %s236
                %s255 = scalar_select %p254, 0, %s253
                %s256 = smul.u32 %s255, 8
                %s257 = smul.u32 %s255, 24
                %s258 = scalar_lea.vmem %s239, %s256 [#allocation4]
                %s259 = scalar_lea.vmem %s241, %s257
              $region56: #{tpu_custom_call.1} parent=43 // loop_footer
                %s245 = sadd.s32 %s243, 1
              $region57: #{tpu_custom_call.1} parent=43 // loop_footer_branch
                %242 = sbr.rel target = $region53
              $region58: #{tpu_custom_call.1} parent=43 // loop_exit
                _
            $region44: #{tpu_custom_call.1} parent=35 // pred_fallthru
              _
          $region36: #{tpu_custom_call.1} parent=31 // pred_fallthru
            _
          %314 = vnop
        $region32: #{tpu_custom_call.1} parent=23 // pred_fallthru
          _
      $region24: #{tpu_custom_call.1} parent=5 // pred_fallthru
        _
      %p315 = scmp.le.s32.totalorder 2, %s10
      // Predicated region
      $region81: #{tpu_custom_call.1} parent=5 // pred_check
        %p316 = pneg %p315
      $region82: #{tpu_custom_call.1} parent=5 // pred_check_branch
        %318 = sbr.rel (%p316) target = $region84
      $region83: #{tpu_custom_call.1} parent=5 // pred_region
        %s319 = ssub.s32 %s10, 2
        // Predicated region
        $region85: #{tpu_custom_call.1} parent=83 // pred_check
          %p320 = pneg %p81
        $region86: #{tpu_custom_call.1} parent=83 // pred_check_branch
          %322 = sbr.rel (%p320) target = $region88
        $region87: #{tpu_custom_call.1} parent=83 // pred_region
          %s323 = sand.u32 %s66, 1
          %s324 = sand.u32 %s66, 1
          %s325 = smul.addr %s324, 32
          %s326 = scalar_lea.vmem [#allocation4], %s325
        $region88: #{tpu_custom_call.1} parent=83 // pred_fallthru
          _
      $region84: #{tpu_custom_call.1} parent=5 // pred_fallthru
        _
    $region6: #{tpu_custom_call.1} parent=1 // loop_footer
      %s14 = sadd.s32 1, %s10
    $region7: #{tpu_custom_call.1} parent=1 // loop_footer_branch
      %9 = sbr.rel target = $region3
    $region8: #{tpu_custom_call.1} parent=1 // loop_exit
      _
    %327 = vsyncpa [#allocation3], 1
    %s328 = scalar_lea.sflag [#allocation3], 1
    %329 = vsyncpa %s328, 1

</llo_original>
